<compile_context>
chip_gen: v6e
topology: v6e:2x2x1
jax: 0.10.0
libtpu: 0.0.40
codegen_flags: <defaults>
</compile_context>

<pallas_src>
import functools

import jax
import jax.numpy as jnp
from jax.experimental import pallas as pl
from jax.experimental.pallas import tpu as pltpu

# Scoped-VMEM limit requested from Mosaic.  32 MiB is legal on every current
# generation (v5e/v6e: 128 MiB physical; v7x: 64 MiB physical, 32 MiB default scoped).
_VMEM_LIMIT_BYTES = 32 * 1024 * 1024


def _pick_class_block(n_cls, per_class_bytes, max_block_bytes, *,
                      requested=None, min_steps=1):
    """Largest class tile such that (a) the per-step VMEM working set (already
    including double-buffering factors passed in via per_class_bytes) stays under
    `max_block_bytes`, (b) the tile divides n_cls (no ragged blocks), (c) the grid has
    at least `min_steps` steps, and (d) — if it costs at most a 2x smaller tile — the
    step count is even so dual-TensorCore parts (v7x) can shard the grid evenly."""
    cap = max(1, max_block_bytes // max(per_class_bytes, 1))
    if requested is not None:
        cap = min(cap, max(1, requested))
    if min_steps > 1:
        cap = min(cap, max(1, n_cls // min_steps))
    cap = min(cap, n_cls)
    divisors = [d for d in range(1, cap + 1) if n_cls % d == 0]
    best = divisors[-1]
    even = [d for d in divisors if (n_cls // d) % 2 == 0]
    if even and even[-1] * 2 >= best:
        best = even[-1]
    return best


# --------------------------------------------------------------------------------------
# Kernel 1 (fallback): batched concat  [prefix | ctx | suffix], CB classes / grid step
# --------------------------------------------------------------------------------------
def _prompt_concat_kernel(ctx_ref, prefix_ref, suffix_hbm, out_ref, sem,
                          *, cb, n_ctx, n_suffix, generic):
    """The suffix rows go HBM -> output VMEM tile by DMA (no vreg round-trip, no
    masked/realigned vst); the DMA is overlapped with the small [SOS | ctx] head
    store, which is a single store starting at sublane-aligned row 0."""
    i = pl.program_id(0)
    ctx_dim = out_ref.shape[2]
    row0 = pl.multiple_of(i * cb, cb)

    suffix_cp = pltpu.make_async_copy(
        suffix_hbm.at[pl.ds(row0, cb)],
        out_ref.at[:, pl.ds(1 + n_ctx, n_suffix), :],
        sem)
    suffix_cp.start()

    if generic:
        ctx = jnp.broadcast_to(
            ctx_ref[...].astype(out_ref.dtype)[None], (cb, n_ctx, ctx_dim))
    else:
        ctx = ctx_ref[...].astype(out_ref.dtype)
    # One merged store for rows [0, 1+n_ctx) instead of two misaligned partial stores.
    out_ref[:, :1 + n_ctx, :] = jnp.concatenate([prefix_ref[...], ctx], axis=1)

    suffix_cp.wait()


def prompt_learner_forward(ctx, token_prefix, token_suffix, *, class_block=None):
    """Pallas implementation of PromptLearner.forward() ('end' position, no perturb).

    ctx          : (n_ctx, ctx_dim) generic context OR (n_cls, n_ctx, ctx_dim) CSC
    token_prefix : (n_cls, 1, ctx_dim)
    token_suffix : (n_cls, n_suffix, ctx_dim)
    returns      : (n_cls, 1 + n_ctx + n_suffix, ctx_dim), dtype of token_prefix
    """
    n_cls, _, ctx_dim = token_prefix.shape
    n_suffix = token_suffix.shape[1]
    out_dtype = token_prefix.dtype
    assert token_suffix.dtype == out_dtype, "prefix/suffix embedding dtypes must match"
    generic = ctx.ndim == 2
    n_ctx = ctx.shape[0] if generic else ctx.shape[1]
    seq_len = 1 + n_ctx + n_suffix

    it_out = jnp.dtype(out_dtype).itemsize
    it_ctx = jnp.dtype(ctx.dtype).itemsize
    # Double-buffered VMEM working set per class: output block + prefix block
    # (+ CSC ctx block). The suffix never enters VMEM (direct HBM -> tile DMA).
    per_class = 2 * (seq_len + 1) * ctx_dim * it_out
    if not generic:
        per_class += 2 * n_ctx * ctx_dim * it_ctx
    cb = _pick_class_block(n_cls, per_class, max_block_bytes=20 << 20,
                           requested=class_block, min_steps=2)

    if generic:
        ctx_spec = pl.BlockSpec((n_ctx, ctx_dim), lambda i: (0, 0))
    else:
        ctx_spec = pl.BlockSpec((cb, n_ctx, ctx_dim), lambda i: (i, 0, 0))

    kernel = functools.partial(_prompt_concat_kernel, cb=cb, n_ctx=n_ctx,
                               n_suffix=n_suffix, generic=generic)
    bytes_accessed = int(ctx.nbytes + token_prefix.nbytes + token_suffix.nbytes
                         + n_cls * seq_len * ctx_dim * it_out)

    return pl.pallas_call(
        kernel,
        out_shape=jax.ShapeDtypeStruct((n_cls, seq_len, ctx_dim), out_dtype),
        grid_spec=pltpu.PrefetchScalarGridSpec(
            num_scalar_prefetch=0,
            grid=(n_cls // cb,),
            in_specs=[
                ctx_spec,
                pl.BlockSpec((cb, 1, ctx_dim), lambda i: (i, 0, 0)),
                pl.BlockSpec(memory_space=pl.ANY),     # suffix stays in HBM
            ],
            out_specs=pl.BlockSpec((cb, seq_len, ctx_dim), lambda i: (i, 0, 0)),
            scratch_shapes=[pltpu.SemaphoreType.DMA(())],
        ),
        compiler_params=pltpu.CompilerParams(
            dimension_semantics=("parallel",),
            vmem_limit_bytes=_VMEM_LIMIT_BYTES),
        cost_estimate=pl.CostEstimate(flops=0, transcendentals=0,
                                      bytes_accessed=bytes_accessed),
    )(ctx, token_prefix, token_suffix)


# --------------------------------------------------------------------------------------
# Kernel 2 (production): in-place ctx scatter into the aliased token-embedding buffer
# --------------------------------------------------------------------------------------
def _ctx_scatter_kernel(ctx_ref, emb_ref, out_ref, slab_ref, sem,
                        *, cb, n_ctx, n_inner, generic):
    """One step = CB classes: overwrite only seq rows [1, 1+n_ctx) of the aliased
    embedding buffer with the (cast, broadcast) learned context.  Writeback DMAs are
    double-buffered across the inner ("arbitrary") grid axis so >=2 are in flight."""
    del emb_ref  # same HBM buffer as out_ref (input_output_aliases)
    o = pl.program_id(0)          # "parallel" chunk: shardable across TensorCores
    j = pl.program_id(1)          # "arbitrary" step: sequential, carries DMA state
    blk = o * n_inner + j
    slot = j % 2
    ctx_dim = slab_ref.shape[-1]

    def wait_slot(s):
        # Same-shaped copy descriptor just to wait on sem[s] for the right byte count.
        pltpu.make_async_copy(
            slab_ref.at[s],
            out_ref.at[pl.ds(0, cb), pl.ds(1, n_ctx), :],
            sem.at[s]).wait()

    # Drain the DMA issued from this slot two inner steps ago before reusing it.
    @pl.when(j >= 2)
    def _():
        wait_slot(slot)

    def fill():
        if generic:
            slab_ref[slot] = jnp.broadcast_to(
                ctx_ref[...].astype(slab_ref.dtype)[None], (cb, n_ctx, ctx_dim))
        else:
            slab_ref[slot] = ctx_ref[...].astype(slab_ref.dtype)

    if generic:
        # Shared context: slab contents are identical every step — fill each slot only
        # on its first use; later steps just re-issue the DMA from the filled slab.
        pl.when(j < 2)(fill)
    else:
        fill()

    row0 = pl.multiple_of(blk * cb, cb)
    pltpu.make_async_copy(
        slab_ref.at[slot],
        out_ref.at[pl.ds(row0, cb), pl.ds(1, n_ctx), :],
        sem.at[slot]).start()

    # Last inner step of this chunk: drain everything still in flight.
    @pl.when(j == n_inner - 1)
    def _():
        wait_slot(slot)
        if n_inner > 1:
            wait_slot(1 - slot)


def prompt_learner_forward_inplace(ctx, token_embedding, n_ctx, *, class_block=None):
    """Fast path: `token_embedding` is the full (n_cls, seq_len, ctx_dim) embedding the
    prefix/suffix buffers were sliced from.  It is aliased to the output; only the
    n_ctx learned-context rows are written (10-40x less HBM traffic than the concat
    path for real CLIP).  Result equals concat([prefix, ctx, suffix], 1)."""
    n_cls, seq_len, ctx_dim = token_embedding.shape
    out_dtype = token_embedding.dtype
    generic = ctx.ndim == 2
    assert (ctx.shape[0] if generic else ctx.shape[1]) == n_ctx
    assert 1 + n_ctx <= seq_len

    it_out = jnp.dtype(out_dtype).itemsize
    it_ctx = jnp.dtype(ctx.dtype).itemsize
    # Working set per class: double-buffered slab (+ double-buffered CSC ctx block).
    per_class = 2 * n_ctx * ctx_dim * it_out
    if not generic:
        per_class += 2 * n_ctx * ctx_dim * it_ctx
    cb = _pick_class_block(n_cls, per_class, max_block_bytes=12 << 20,
                           requested=class_block, min_steps=4)
    n_blocks = n_cls // cb
    n_outer = 2 if (n_blocks >= 2 and n_blocks % 2 == 0) else 1
    n_inner = n_blocks // n_outer

    if generic:
        ctx_spec = pl.BlockSpec((n_ctx, ctx_dim), lambda o, j: (0, 0))
    else:
        ctx_spec = pl.BlockSpec((cb, n_ctx, ctx_dim),
                                lambda o, j: (o * n_inner + j, 0, 0))

    kernel = functools.partial(_ctx_scatter_kernel, cb=cb, n_ctx=n_ctx,
                               n_inner=n_inner, generic=generic)
    bytes_accessed = int(ctx.nbytes + n_cls * n_ctx * ctx_dim * it_out)

    return pl.pallas_call(
        kernel,
        out_shape=jax.ShapeDtypeStruct((n_cls, seq_len, ctx_dim), out_dtype),
        grid_spec=pltpu.PrefetchScalarGridSpec(
            num_scalar_prefetch=0,
            grid=(n_outer, n_inner),
            in_specs=[
                ctx_spec,
                pl.BlockSpec(memory_space=pl.ANY),   # full embedding, aliased to output
            ],
            out_specs=pl.BlockSpec(memory_space=pl.ANY),
            scratch_shapes=[
                pltpu.VMEM((2, cb, n_ctx, ctx_dim), out_dtype),   # double-buffered slab
                pltpu.SemaphoreType.DMA((2,)),
            ],
        ),
        input_output_aliases={1: 0},
        compiler_params=pltpu.CompilerParams(
            dimension_semantics=("parallel", "arbitrary"),
            vmem_limit_bytes=_VMEM_LIMIT_BYTES),
        cost_estimate=pl.CostEstimate(flops=0, transcendentals=0,
                                      bytes_accessed=bytes_accessed),
    )(ctx, token_embedding)


if __name__ == "__main__":
    # Small CLIP-like setup (real CLIP: seq_len=77, ctx_dim=512, n_cls up to ~1000).
    n_cls, n_ctx, ctx_dim, seq_len = 48, 4, 128, 77
    n_suffix = seq_len - 1 - n_ctx

    key = jax.random.PRNGKey(0)
    k_ctx, k_csc, k_emb = jax.random.split(key, 3)

    # nn.init.normal_(ctx_vectors, std=0.02)
    ctx_generic = (0.02 * jax.random.normal(k_ctx, (n_ctx, ctx_dim))).astype(jnp.float32)
    ctx_csc = (0.02 * jax.random.normal(k_csc, (n_cls, n_ctx, ctx_dim))).astype(jnp.float32)

    # synthetic clip_model.token_embedding(tokenized_prompts)
    embedding = jax.random.normal(k_emb, (n_cls, seq_len, ctx_dim)).astype(jnp.float32)
    token_prefix = embedding[:, :1, :]             # (n_cls, 1, ctx_dim)
    token_suffix = embedding[:, 1 + n_ctx:, :]     # (n_cls, n_suffix, ctx_dim)

    def reference(ctx, prefix, suffix):
        c = ctx if ctx.ndim == 3 else jnp.broadcast_to(ctx[None], (prefix.shape[0],) + ctx.shape)
        return jnp.concatenate([prefix, c.astype(prefix.dtype), suffix], axis=1)

    # --- concat kernel (module-equivalent forward), generic + CSC contexts ---
    out_gen = jax.block_until_ready(
        prompt_learner_forward(ctx_generic, token_prefix, token_suffix))
    assert out_gen.shape == (n_cls, seq_len, ctx_dim) and out_gen.dtype == jnp.float32
    assert jnp.allclose(out_gen, reference(ctx_generic, token_prefix, token_suffix))

    out_csc = jax.block_until_ready(
        prompt_learner_forward(ctx_csc, token_prefix, token_suffix, class_block=16))
    assert jnp.allclose(out_csc, reference(ctx_csc, token_prefix, token_suffix))

    # mixed precision: low-precision token embeddings with an fp32 learned context
    emb_bf16 = embedding.astype(jnp.bfloat16)
    out_bf16 = jax.block_until_ready(
        prompt_learner_forward(ctx_generic, emb_bf16[:, :1, :], emb_bf16[:, 1 + n_ctx:, :]))
    assert out_bf16.dtype == jnp.bfloat16
    assert jnp.allclose(
        out_bf16, reference(ctx_generic, emb_bf16[:, :1, :], emb_bf16[:, 1 + n_ctx:, :]))

    # --- in-place aliased kernel (production path; writes only the n_ctx ctx rows) ---
    out_ip_gen = jax.block_until_ready(
        prompt_learner_forward_inplace(ctx_generic, embedding, n_ctx, class_block=8))
    assert jnp.allclose(out_ip_gen, reference(ctx_generic, token_prefix, token_suffix))

    out_ip_csc = jax.block_until_ready(
        prompt_learner_forward_inplace(ctx_csc, embedding, n_ctx))
    assert jnp.allclose(out_ip_csc, reference(ctx_csc, token_prefix, token_suffix))

    out_ip_bf16 = jax.block_until_ready(
        prompt_learner_forward_inplace(ctx_csc, emb_bf16, n_ctx))
    assert out_ip_bf16.dtype == jnp.bfloat16
    assert jnp.allclose(
        out_ip_bf16, reference(ctx_csc, emb_bf16[:, :1, :], emb_bf16[:, 1 + n_ctx:, :]))

    print("KERNEL_OK")
</pallas_src>

<mosaic_0001>
module attributes {stable_mosaic.version = 11 : i64} {
  func.func @_prompt_concat_kernel(%arg0: i32, %arg1: memref<4x128xf32, #tpu.memory_space<vmem>>, %arg2: memref<24x1x128xf32, #tpu.memory_space<vmem>>, %arg3: memref<48x72x128xf32, #tpu.memory_space<any>>, %arg4: memref<24x77x128xf32, #tpu.memory_space<vmem>>, %arg5: memref<!tpu.dma_semaphore, #tpu.memory_space<semaphore_mem>>) attributes {dimension_semantics = [#tpu.dimension_semantics<parallel>], iteration_bounds = array<i64: 2>, scalar_prefetch = 0 : i64, scratch_operands = 1 : i64, tpu.core_type = #tpu.core_type<tc>, window_params = [{pipeline_mode = #tpu.pipeline_mode<synchronous>, transform_indices = @transform_0, window_bounds = array<i64: 4, 128>}, {transform_indices = @transform_1, window_bounds = array<i64: 24, 1, 128>}, {}, {transform_indices = @transform_3, window_bounds = array<i64: 24, 77, 128>}]} {
    %c24_i32 = arith.constant 24 : i32
    %0 = arith.muli %arg0, %c24_i32 : i32
    %1 = tpu.assume_multiple %0, 24 : i32
    %c0_i32 = arith.constant 0 : i32
    %c0_i32_0 = arith.constant 0 : i32
    %2 = tpu.memref_slice %arg3[%1, %c0_i32, %c0_i32_0] : memref<48x72x128xf32, #tpu.memory_space<any>> -> memref<24x72x128xf32, #tpu.memory_space<any>>
    %c0_i32_1 = arith.constant 0 : i32
    %c5_i32 = arith.constant 5 : i32
    %c0_i32_2 = arith.constant 0 : i32
    %3 = tpu.memref_slice %arg4[%c0_i32_1, %c5_i32, %c0_i32_2] : memref<24x77x128xf32, #tpu.memory_space<vmem>> -> memref<24x72x128xf32, #tpu.memory_space<vmem>>
    tpu.enqueue_dma source(%2 : memref<24x72x128xf32, #tpu.memory_space<any>>) target(%3 : memref<24x72x128xf32, #tpu.memory_space<vmem>>) target_semaphore(%arg5 : memref<!tpu.dma_semaphore, #tpu.memory_space<semaphore_mem>>)
    %c0 = arith.constant 0 : index
    %c0_3 = arith.constant 0 : index
    %4 = vector.load %arg1[%c0, %c0_3] : memref<4x128xf32, #tpu.memory_space<vmem>>, vector<4x128xf32>
    %5 = vector.shape_cast %4 : vector<4x128xf32> to vector<1x4x128xf32>
    %6 = vector.shape_cast %5 : vector<1x4x128xf32> to vector<1x4x128xf32>
    %7 = vector.broadcast %6 : vector<1x4x128xf32> to vector<24x4x128xf32>
    %c0_4 = arith.constant 0 : index
    %c0_5 = arith.constant 0 : index
    %c0_6 = arith.constant 0 : index
    %8 = vector.load %arg2[%c0_4, %c0_5, %c0_6] : memref<24x1x128xf32, #tpu.memory_space<vmem>>, vector<24x1x128xf32>
    %9 = tpu.concatenate %8, %7 in 1 : vector<24x1x128xf32>, vector<24x4x128xf32> -> vector<24x5x128xf32>
    %c0_7 = arith.constant 0 : index
    %c0_8 = arith.constant 0 : index
    %c0_9 = arith.constant 0 : index
    %10 = vector.load %arg4[%c0_7, %c0_8, %c0_9] : memref<24x77x128xf32, #tpu.memory_space<vmem>>, vector<24x5x128xf32>
    tpu.vector_store %arg4[%c0_7, %c0_8, %c0_9], %9 {strides = array<i32>} : memref<24x77x128xf32, #tpu.memory_space<vmem>>, vector<24x5x128xf32>,
    %c0_i32_10 = arith.constant 0 : i32
    %c0_i32_11 = arith.constant 0 : i32
    %11 = tpu.memref_slice %arg3[%1, %c0_i32_10, %c0_i32_11] : memref<48x72x128xf32, #tpu.memory_space<any>> -> memref<24x72x128xf32, #tpu.memory_space<any>>
    %c0_i32_12 = arith.constant 0 : i32
    %c5_i32_13 = arith.constant 5 : i32
    %c0_i32_14 = arith.constant 0 : i32
    %12 = tpu.memref_slice %arg4[%c0_i32_12, %c5_i32_13, %c0_i32_14] : memref<24x77x128xf32, #tpu.memory_space<vmem>> -> memref<24x72x128xf32, #tpu.memory_space<vmem>>
    tpu.wait_dma2 semaphore(%arg5 : memref<!tpu.dma_semaphore, #tpu.memory_space<semaphore_mem>>) src(%11 : memref<24x72x128xf32, #tpu.memory_space<any>>) dst(%12 : memref<24x72x128xf32, #tpu.memory_space<vmem>>)
    return
  }
  func.func @transform_0(%arg0: i32) -> (i32, i32) {
    %c0_i32 = arith.constant 0 : i32
    %c0_i32_0 = arith.constant 0 : i32
    %c0_i32_1 = arith.constant 0 : i32
    return %c0_i32, %c0_i32_0 : i32, i32
  }
  func.func @transform_1(%arg0: i32) -> (i32, i32, i32) {
    %c0_i32 = arith.constant 0 : i32
    %c0_i32_0 = arith.constant 0 : i32
    %c0_i32_1 = arith.constant 0 : i32
    return %arg0, %c0_i32, %c0_i32_0 : i32, i32, i32
  }
  func.func @transform_3(%arg0: i32) -> (i32, i32, i32) {
    %c0_i32 = arith.constant 0 : i32
    %c0_i32_0 = arith.constant 0 : i32
    %c0_i32_1 = arith.constant 0 : i32
    return %arg0, %c0_i32, %c0_i32_0 : i32, i32, i32
  }
}

</mosaic_0001>

<llo_original>
// kernel: tpu_custom_call.1
$region0: #{tpu_custom_call.1}
  #allocation0 [shape = 'u32[]', space=smem, size = 0x4, offset = 0x4, fixed_abs, tag = 'smem constant byte address 0x4 - core index']
  #allocation1 [shape = 'u32[144,128]{1,0:T(1,128)}', space=vmem, size = 0x12000, scoped, tag = 'internal scratch']
  #allocation2 [shape = 's32[1]{0}', space=sflag, size = 0x4, scoped, tag = 'scratch operand']
  #allocation7 [shape = 's32[]', space=sflag, size = 0x4, offset = 0, fixed_abs, tag = 'sflag constant byte address 0x0 - dummy sync flag']
  %s0 = inlined_call_operand.hbm [shape: f32[4,128], index: 0, kind: input, shape index: {}]
  %s1 = inlined_call_operand.hbm [shape: f32[48,1,128], index: 1, kind: input, shape index: {}]
  %s2 = inlined_call_operand.hbm [shape: f32[48,72,128], index: 2, kind: input, shape index: {}]
  %s3 = inlined_call_operand.vmem [shape: f32[48,77,128], index: 3, kind: output, shape index: {}]
  %s4 = sld [smem:[#allocation0]]
  $region49: #{tpu_custom_call.1} parent=0
    _
  %s6 = ssub.s32 1, %s4
  %s7 = scalar_select 0, %s6, %s4
  $region1: #{tpu_custom_call.1} parent=0
    #allocation3 [shape = 'u8[2048]{0}', space=vmem, size = 0x800, scoped, tag = 'input window, operand 0, single buffered']
    #allocation4 [shape = 's32[2]{0}', space=sflag, size = 0x8, scoped, tag = 'scoped memory for tpu_custom_call.1']
    #allocation5 [shape = 'u8[24576]{0}', space=vmem, size = 0x6000, scoped, tag = 'input window, operand 1']
    #allocation6 [shape = 's32[2]{0}', space=sflag, size = 0x8, scoped, tag = 'scoped memory for tpu_custom_call.1']
    %8 = vsyncpa [#allocation4], 0
    %9 = vsyncpa [#allocation6], 0
    %s10 = scalar_lea.sflag [#allocation6], 1
    %11 = vsyncpa %s10, 0
    loop: start=0, step=1, limit=4
    $region2: #{tpu_custom_call.1} parent=1 // loop_pre_header
      _
    $region3: #{tpu_custom_call.1} parent=1 // loop_header
      %s13 = sphi 0, %s17
      %p14 = scmp.ge.s32.totalorder %s13, 4
      %s21 = sphi 0, %s21
      %s23 = sphi 0, %s21
      %s24 = sphi 0, %s23
      %s38 = sphi 0, %s24
      %s44 = sphi 0, %s46
      %s47 = sphi 0, %s44
      %s48 = sphi 0, %s47
      %s64 = sphi 0, %s48
      %s70 = sphi 0, %s72
      %s73 = sphi 0, %s70
      %s74 = sphi 0, %s73
      %s90 = sphi 0, %s74
    $region4: #{tpu_custom_call.1} parent=1 // loop_header_branch
      %16 = sbr.rel (%p14) target = $region8
    $region5: #{tpu_custom_call.1} parent=1 // loop_body
      %s18 = ssub.s32 %s13, 1
      %s19 = ssub.s32 %s13, 2
      %s20 = sadd.s32 %s13, 1
      %s22 = sadd.s32 %s21, 1
      %p25 = scmp.eq.s32.totalorder %s13, 1
      %p26 = scmp.ne.s32.totalorder %s21, %s23
      %p27 = scmp.eq.s32.totalorder %s13, 0
      %p28 = por %p26, %p27
      %p29 = scmp.ne.s32.totalorder %s21, %s23
      %p30 = scmp.eq.s32.totalorder %s18, 1
      %p31 = por %p29, %p30
      %p32 = scmp.ne.s32.totalorder %s23, %s24
      %p33 = scmp.eq.s32.totalorder %s18, 0
      %p34 = por %p32, %p33
      %p35 = scmp.ne.s32.totalorder %s23, %s24
      %p36 = scmp.eq.s32.totalorder %s19, 1
      %p37 = por %p35, %p36
      %p39 = scmp.ne.s32.totalorder %s24, %s38
      %p40 = scmp.eq.s32.totalorder %s19, 0
      %p41 = por %p39, %p40
      %s42 = ssub.s32 %s13, %s20
      %p43 = scmp.eq.s32.totalorder %s42, 0
      %s45 = sadd.s32 %s44, 1
      %s46 = scalar_select %p43, %s44, %s45
      %p49 = pneg %p43
      %p50 = scmp.eq.s32.totalorder %s13, 1
      %p51 = por %p49, %p50
      %p52 = scmp.ne.s32.totalorder %s44, %s47
      %p53 = scmp.eq.s32.totalorder %s13, 0
      %p54 = por %p52, %p53
      %p55 = scmp.ne.s32.totalorder %s44, %s47
      %p56 = scmp.eq.s32.totalorder %s18, 1
      %p57 = por %p55, %p56
      %p58 = scmp.ne.s32.totalorder %s47, %s48
      %p59 = scmp.eq.s32.totalorder %s18, 0
      %p60 = por %p58, %p59
      %p61 = scmp.ne.s32.totalorder %s47, %s48
      %p62 = scmp.eq.s32.totalorder %s19, 1
      %p63 = por %p61, %p62
      %p65 = scmp.ne.s32.totalorder %s48, %s64
      %p66 = scmp.eq.s32.totalorder %s19, 0
      %p67 = por %p65, %p66
      %s68 = ssub.s32 %s13, %s20
      %p69 = scmp.eq.s32.totalorder %s68, 0
      %s71 = sadd.s32 %s70, 1
      %s72 = scalar_select %p69, %s70, %s71
      %p75 = pneg %p69
      %p76 = scmp.eq.s32.totalorder %s13, 1
      %p77 = por %p75, %p76
      %p78 = scmp.ne.s32.totalorder %s70, %s73
      %p79 = scmp.eq.s32.totalorder %s13, 0
      %p80 = por %p78, %p79
      %p81 = scmp.ne.s32.totalorder %s70, %s73
      %p82 = scmp.eq.s32.totalorder %s18, 1
      %p83 = por %p81, %p82
      %p84 = scmp.ne.s32.totalorder %s73, %s74
      %p85 = scmp.eq.s32.totalorder %s18, 0
      %p86 = por %p84, %p85
      %p87 = scmp.ne.s32.totalorder %s73, %s74
      %p88 = scmp.eq.s32.totalorder %s19, 1
      %p89 = por %p87, %p88
      %p91 = scmp.ne.s32.totalorder %s74, %s90
      %p92 = scmp.eq.s32.totalorder %s19, 0
      %p93 = por %p91, %p92
      %p94 = scmp.le.s32.totalorder 1, %s13
      %p95 = scmp.lt.s32.totalorder %s13, 3
      %p96 = pnand %p94, %p95
      %p97 = pneg %p96
      // Predicated region
      $region9: #{tpu_custom_call.1} parent=5 // pred_check
        _
      $region10: #{tpu_custom_call.1} parent=5 // pred_check_branch
        %99 = sbr.rel (%p96) target = $region12
      $region11: #{tpu_custom_call.1} parent=5 // pred_region
        %s100 = ssub.s32 %s13, 1
        // Predicated region
        $region13: #{tpu_custom_call.1} parent=11 // pred_check
          %p101 = pneg %p34
        $region14: #{tpu_custom_call.1} parent=11 // pred_check_branch
          %103 = sbr.rel (%p101) target = $region16
        $region15: #{tpu_custom_call.1} parent=11 // pred_region
          %s105 = ssub.s32 64, 64
          %106 = vsyncadd [#allocation4], %s105
          %s108 = sshll.u32 [#allocation3], 4
          %s109 = int_to_ptr.vmem [resolvable:$true] %s108
          %111 = dma.hbm_to_vmem [thread:$0]  %s0, 64, %s109, [#allocation4]
        $region16: #{tpu_custom_call.1} parent=11 // pred_fallthru
          _
      $region12: #{tpu_custom_call.1} parent=5 // pred_fallthru
        _
      %p112 = scmp.lt.s32.totalorder %s13, 2
      // Predicated region
      $region17: #{tpu_custom_call.1} parent=5 // pred_check
        %p113 = pneg %p112
      $region18: #{tpu_custom_call.1} parent=5 // pred_check_branch
        %115 = sbr.rel (%p113) target = $region20
      $region19: #{tpu_custom_call.1} parent=5 // pred_region
        // Predicated region
        $region21: #{tpu_custom_call.1} parent=19 // pred_check
          %p116 = pneg %p54
        $region22: #{tpu_custom_call.1} parent=19 // pred_check_branch
          %118 = sbr.rel (%p116) target = $region24
        $region23: #{tpu_custom_call.1} parent=19 // pred_region
          %s119 = sand.u32 %s44, 1
          %s120 = scalar_lea.sflag [#allocation6], %s119
          %s121 = sand.u32 %s44, 1
          %s122 = smul.addr %s121, 24
          %s123 = scalar_lea.vmem [#allocation5], %s122
          %s124 = smul.u32 24, %s13
          %s126 = ssub.s32 384, 384
          %127 = vsyncadd %s120, %s126
          %s128 = smul.addr %s124, 16
          %s129 = scalar_lea.hbm %s1, %s128
          %s130 = sshll.u32 %s123, 4
          %s131 = int_to_ptr.vmem [resolvable:$true] %s130
          %136 = dma.hbm_to_vmem [thread:$0]  %s129, 384, %s131, %s120, 16, 16, 1
        $region24: #{tpu_custom_call.1} parent=19 // pred_fallthru
          _
      $region20: #{tpu_custom_call.1} parent=5 // pred_fallthru
        _
      %p137 = scmp.le.s32.totalorder 1, %s13
      %p138 = scmp.lt.s32.totalorder %s13, 3
      %p139 = pnand %p137, %p138
      %p140 = pneg %p139
      // Predicated region
      $region25: #{tpu_custom_call.1} parent=5 // pred_check
        _
      $region26: #{tpu_custom_call.1} parent=5 // pred_check_branch
        %142 = sbr.rel (%p139) target = $region28
      $region27: #{tpu_custom_call.1} parent=5 // pred_region
        %s143 = ssub.s32 %s13, 1
        // Predicated region
        $region29: #{tpu_custom_call.1} parent=27 // pred_check
          %p144 = pneg %p34
        $region30: #{tpu_custom_call.1} parent=27 // pred_check_branch
          %146 = sbr.rel (%p144) target = $region32
        $region31: #{tpu_custom_call.1} parent=27 // pred_region
          %147 = dma.done [#allocation4], 64
        $region32: #{tpu_custom_call.1} parent=27 // pred_fallthru
          _
        %s148 = sand.u32 %s47, 1
        %s149 = scalar_lea.sflag [#allocation6], %s148
        %s150 = sand.u32 %s47, 1
        %s151 = smul.addr %s150, 24
        %s152 = scalar_lea.vmem [#allocation5], %s151
        // Predicated region
        $region33: #{tpu_custom_call.1} parent=27 // pred_check
          %p153 = pneg %p60
        $region34: #{tpu_custom_call.1} parent=27 // pred_check_branch
          %155 = sbr.rel (%p153) target = $region36
        $region35: #{tpu_custom_call.1} parent=27 // pred_region
          %156 = dma.done %s149, 384
        $region36: #{tpu_custom_call.1} parent=27 // pred_fallthru
          _
        %p157 = pneg %p34
        %p158 = pneg %p31
        %s159 = sand.u32 %s47, 1
        %s160 = scalar_lea.sflag [#allocation6], %s159
        %s161 = sand.u32 %s47, 1
        %s162 = smul.addr %s161, 24
        %s163 = scalar_lea.vmem [#allocation5], %s162
        %p164 = pneg %p60
        %p165 = pneg %p57
        %p166 = pneg %p86
        %p167 = pneg %p83
        %s168 = smul.u32 24, %s18
        %p169 = scmp.lt.s32.totalorder %s168, 47
        %s170 = scalar_select %p169, %s168, 47
        %s171 = smul.addr %s170, 10
        %s172 = smul.addr %s171, 8
        %s173 = scalar_lea.vmem %s3, %s172
        %s174 = smul.u32 24, %s18
        %s175 = smul.u32 24, %s18
        %p176 = scmp.lt.s32.totalorder %s175, 47
        %s177 = scalar_select %p176, %s175, 47
        %s178 = smul.addr %s177, 10
        %s179 = smul.addr %s178, 8
        %s180 = scalar_lea.vmem %s3, %s179
        %s181 = smul.u32 24, %s18
        %s182 = smul.u32 %s18, 24
        %s183 = smul.u32 %s182, 72
        %s184 = smul.addr %s183, 16
        %s185 = scalar_lea.hbm %s2, %s184
        %s186 = scalar_lea.vmem %s180, 5
        %s188 = sshll.u32 %s186, 4
        %s189 = int_to_ptr.vmem [resolvable:$true] %s188
        %191 = dma.hbm_to_vmem [thread:$0]  %s185, 27648, %s189, [#allocation2], 1152, 1280, 72
        %v192 = vld [vmem:[#allocation3] sm:$0xf]
        %v193 = vld [vmem:[%s152] sm:$0x1]
        %v194 = vld [vmem:[%s152 + $0x1] sm:$0x1]
        %v195 = vld [vmem:[%s152 + $0x2] sm:$0x1]
        %v196 = vld [vmem:[%s152 + $0x3] sm:$0x1]
        %v197 = vld [vmem:[%s152 + $0x4] sm:$0x1]
        %v198 = vld [vmem:[%s152 + $0x5] sm:$0x1]
        %v199 = vld [vmem:[%s152 + $0x6] sm:$0x1]
        %v200 = vld [vmem:[%s152 + $0x7] sm:$0x1]
        %v201 = vld [vmem:[%s152 + $0x8] sm:$0x1]
        %v202 = vld [vmem:[%s152 + $0x9] sm:$0x1]
        %v203 = vld [vmem:[%s152 + $0xa] sm:$0x1]
        %v204 = vld [vmem:[%s152 + $0xb] sm:$0x1]
        %v205 = vld [vmem:[%s152 + $0xc] sm:$0x1]
        %v206 = vld [vmem:[%s152 + $0xd] sm:$0x1]
        %v207 = vld [vmem:[%s152 + $0xe] sm:$0x1]
        %v208 = vld [vmem:[%s152 + $0xf] sm:$0x1]
        %v209 = vld [vmem:[%s152 + $0x10] sm:$0x1]
        %v210 = vld [vmem:[%s152 + $0x11] sm:$0x1]
        %v211 = vld [vmem:[%s152 + $0x12] sm:$0x1]
        %v212 = vld [vmem:[%s152 + $0x13] sm:$0x1]
        %v213 = vld [vmem:[%s152 + $0x14] sm:$0x1]
        %v214 = vld [vmem:[%s152 + $0x15] sm:$0x1]
        %v215 = vld [vmem:[%s152 + $0x16] sm:$0x1]
        %v216 = vld [vmem:[%s152 + $0x17] sm:$0x1]
        %v218 = vrot.slane %v192, 7
        %vm220 = vcmask 1040384
        %v221 = vsel %vm220, %v193, %v218
        %v222 = vsel %vm220, %v194, %v218
        %v223 = vsel %vm220, %v195, %v218
        %v224 = vsel %vm220, %v196, %v218
        %v225 = vsel %vm220, %v197, %v218
        %v226 = vsel %vm220, %v198, %v218
        %v227 = vsel %vm220, %v199, %v218
        %v228 = vsel %vm220, %v200, %v218
        %v229 = vsel %vm220, %v201, %v218
        %v230 = vsel %vm220, %v202, %v218
        %v231 = vsel %vm220, %v203, %v218
        %v232 = vsel %vm220, %v204, %v218
        %v233 = vsel %vm220, %v205, %v218
        %v234 = vsel %vm220, %v206, %v218
        %v235 = vsel %vm220, %v207, %v218
        %v236 = vsel %vm220, %v208, %v218
        %v237 = vsel %vm220, %v209, %v218
        %v238 = vsel %vm220, %v210, %v218
        %v239 = vsel %vm220, %v211, %v218
        %v240 = vsel %vm220, %v212, %v218
        %v241 = vsel %vm220, %v213, %v218
        %v242 = vsel %vm220, %v214, %v218
        %v243 = vsel %vm220, %v215, %v218
        %v244 = vsel %vm220, %v216, %v218
        %245 = vst [vmem:[%s180] sm:$0x1f] %v221
        %246 = vst [vmem:[%s180 + $0x50] sm:$0x1f] %v222
        %247 = vst [vmem:[%s180 + $0xa0] sm:$0x1f] %v223
        %248 = vst [vmem:[%s180 + $0xf0] sm:$0x1f] %v224
        %249 = vst [vmem:[%s180 + $0x140] sm:$0x1f] %v225
        %250 = vst [vmem:[%s180 + $0x190] sm:$0x1f] %v226
        %251 = vst [vmem:[%s180 + $0x1e0] sm:$0x1f] %v227
        %252 = vst [vmem:[%s180 + $0x230] sm:$0x1f] %v228
        %253 = vst [vmem:[%s180 + $0x280] sm:$0x1f] %v229
        %254 = vst [vmem:[%s180 + $0x2d0] sm:$0x1f] %v230
        %255 = vst [vmem:[%s180 + $0x320] sm:$0x1f] %v231
        %256 = vst [vmem:[%s180 + $0x370] sm:$0x1f] %v232
        %257 = vst [vmem:[%s180 + $0x3c0] sm:$0x1f] %v233
        %258 = vst [vmem:[%s180 + $0x410] sm:$0x1f] %v234
        %259 = vst [vmem:[%s180 + $0x460] sm:$0x1f] %v235
        %260 = vst [vmem:[%s180 + $0x4b0] sm:$0x1f] %v236
        %261 = vst [vmem:[%s180 + $0x500] sm:$0x1f] %v237
        %262 = vst [vmem:[%s180 + $0x550] sm:$0x1f] %v238
        %263 = vst [vmem:[%s180 + $0x5a0] sm:$0x1f] %v239
        %264 = vst [vmem:[%s180 + $0x5f0] sm:$0x1f] %v240
        %265 = vst [vmem:[%s180 + $0x640] sm:$0x1f] %v241
        %266 = vst [vmem:[%s180 + $0x690] sm:$0x1f] %v242
        %267 = vst [vmem:[%s180 + $0x6e0] sm:$0x1f] %v243
        %268 = vst [vmem:[%s180 + $0x730] sm:$0x1f] %v244
        %s269 = smul.u32 24, 72
        %s270 = smul.u32 %s269, 1
        %s271 = sshll.u32 %s270, 4
        %272 = dma.done [#allocation2], %s271
        %s273 = smul.u32 24, %s18
        %p274 = scmp.lt.s32.totalorder %s273, 47
        %s275 = scalar_select %p274, %s273, 47
        %s276 = smul.addr %s275, 10
        %s277 = smul.addr %s276, 8
        %s278 = scalar_lea.vmem %s3, %s277
        // Predicated region
        $region37: #{tpu_custom_call.1} parent=27 // pred_check
          %p279 = pneg %p83
        $region38: #{tpu_custom_call.1} parent=27 // pred_check_branch
          %281 = sbr.rel (%p279) target = $region40
        $region39: #{tpu_custom_call.1} parent=27 // pred_region
          %s282 = smul.u32 24, %s18
        $region40: #{tpu_custom_call.1} parent=27 // pred_fallthru
          _
      $region28: #{tpu_custom_call.1} parent=5 // pred_fallthru
        _
      %p283 = scmp.le.s32.totalorder 2, %s13
      // Predicated region
      $region41: #{tpu_custom_call.1} parent=5 // pred_check
        %p284 = pneg %p283
      $region42: #{tpu_custom_call.1} parent=5 // pred_check_branch
        %286 = sbr.rel (%p284) target = $region44
      $region43: #{tpu_custom_call.1} parent=5 // pred_region
        %s287 = ssub.s32 %s13, 2
        // Predicated region
        $region45: #{tpu_custom_call.1} parent=43 // pred_check
          %p288 = pneg %p89
        $region46: #{tpu_custom_call.1} parent=43 // pred_check_branch
          %290 = sbr.rel (%p288) target = $region48
        $region47: #{tpu_custom_call.1} parent=43 // pred_region
          %s291 = smul.u32 24, %s19
          %p292 = scmp.lt.s32.totalorder %s291, 47
          %s293 = scalar_select %p292, %s291, 47
          %s294 = smul.addr %s293, 10
          %s295 = smul.addr %s294, 8
          %s296 = scalar_lea.vmem %s3, %s295
        $region48: #{tpu_custom_call.1} parent=43 // pred_fallthru
          _
      $region44: #{tpu_custom_call.1} parent=5 // pred_fallthru
        _
    $region6: #{tpu_custom_call.1} parent=1 // loop_footer
      %s17 = sadd.s32 1, %s13
    $region7: #{tpu_custom_call.1} parent=1 // loop_footer_branch
      %12 = sbr.rel target = $region3
    $region8: #{tpu_custom_call.1} parent=1 // loop_exit
      _
    %297 = vsyncpa [#allocation4], 1
    %s298 = scalar_lea.sflag [#allocation4], 1
    %299 = vsyncpa %s298, 1
    %300 = vsyncpa [#allocation6], 1
    %s301 = scalar_lea.sflag [#allocation6], 1
    %302 = vsyncpa %s301, 1
  %303 = vsyncmov [#allocation2]
  %s304 = vpop.sfrf %303
  %p305 = scmp.eq.s32.totalorder %s304, 0
  %p306 = pneg %p305
  %308 = shalt.err (%p306)

</llo_original>
